<compile_context>
chip_gen: v5e
topology: v5e:2x2
jax: 0.10.0
libtpu: 0.0.40
codegen_flags: <defaults>
</compile_context>

<pallas_src>
import functools

import numpy as np
import jax
import jax.numpy as jnp
from jax.experimental import pallas as pl
from jax.experimental.pallas import tpu as pltpu

LANE = 128


def _round_up(n, m):
    return ((n + m - 1) // m) * m


def _pad_to(x, shape):
    return jnp.pad(x, [(0, s - d) for d, s in zip(x.shape, shape)])


# ----------------------------- Pallas kernel -------------------------------

def rnn_fc_sigmoid_kernel(ids_ref,    # VMEM (T*B, 1) int32 token ids, t-major
                          len_ref,    # VMEM (B, 1)  int32 sequence lengths
                          proj_ref,   # VMEM (V_p, H_p) = embedding @ W_ih^T (padded)
                          w_hh_ref,   # VMEM (H_p, H_p) = W_hh^T (padded)
                          b_rnn_ref,  # VMEM (1, H_p)   = b_ih + b_hh (padded)
                          w_fc_ref,   # VMEM (H_p, O_p) = fc.weight^T (padded)
                          b_fc_ref,   # VMEM (1, O_p)   = fc.bias (padded)
                          out_ref):   # VMEM (B, O_p)
    B = len_ref.shape[0]
    TB = ids_ref.shape[0]
    T = TB // B
    V_p = proj_ref.shape[0]
    H_p = w_hh_ref.shape[0]

    # Fused embedding gather + input projection for ALL timesteps: a single
    # one-hot MXU matmul against the precomputed (vocab_p, H_p) projection
    # table.  padding_idx rows of the table are zero, so pad tokens contribute
    # only the bias, as in the reference.
    ids = ids_ref[...]                                                  # (T*B, 1)
    onehot = (jax.lax.broadcasted_iota(jnp.int32, (TB, V_p), 1)
              == ids).astype(jnp.float32)                               # (T*B, V_p)
    p = (jnp.dot(onehot, proj_ref[...], preferred_element_type=jnp.float32)
         + b_rnn_ref[...])                                              # (T*B, H_p)

    len_col = len_ref[...].astype(jnp.float32)                          # (B, 1)
    w_hh = w_hh_ref[...]   # loop-invariant RHS; MXU residency left to Mosaic.

    # Recurrence, fully unrolled (T is static; at T_max=8 a dynamic-bound loop
    # is not worth it).  One (B,H_p)x(H_p,H_p) matmul + tanh on the serial
    # h-chain per step.  p slices are exact (8,128)-tile static slices.
    # Per-row gate keeps a row's hidden state frozen past its own length.
    h = jnp.zeros((B, H_p), jnp.float32)
    for t in range(T):
        h_new = jnp.tanh(
            p[t * B:(t + 1) * B, :]
            + jnp.dot(h, w_hh, preferred_element_type=jnp.float32))
        h = jnp.where(len_col > t, h_new, h)

    # pad_packed_sequence zero-fills rows whose length < max(length), so
    # output[-1] is h_{len[b]} for max-length rows and 0 otherwise.
    maxlen = jnp.max(len_col, axis=0, keepdims=True)                    # (1, 1)
    final = jnp.where(len_col == maxlen, h, 0.0)                        # (B, H_p)

    logits = (jnp.dot(final, w_fc_ref[...], preferred_element_type=jnp.float32)
              + b_fc_ref[...])
    out_ref[...] = jax.nn.sigmoid(logits)


def binary_rnn_pallas(ids, len_col, proj_t, w_hh_t, b_rnn, w_fc_t, b_fc):
    B = len_col.shape[0]
    O_p = w_fc_t.shape[1]
    vmem = pl.BlockSpec(memory_space=pltpu.MemorySpace.VMEM)
    return pl.pallas_call(
        rnn_fc_sigmoid_kernel,
        out_shape=jax.ShapeDtypeStruct((B, O_p), jnp.float32),
        in_specs=[vmem] * 7,
        out_specs=vmem,
        # Explicit scoped-VMEM budget: v5e defaults to 16 MiB scoped and v7x
        # has only 64 MiB physical; current usage is ~100 KiB, but this keeps
        # a headroom story when T*B / vocab grow.
        compiler_params=pltpu.CompilerParams(
            vmem_limit_bytes=32 * 1024 * 1024),
    )(ids, len_col, proj_t, w_hh_t, b_rnn, w_fc_t, b_fc)


# ----------------------------- module wrapper -------------------------------

def init_params(key, vocab_size, embedding_dim, hidden_dim, output_dim, pad_idx):
    ks = jax.random.split(key, 7)
    kinv = 1.0 / np.sqrt(hidden_dim)
    emb = jax.random.normal(ks[0], (vocab_size, embedding_dim), jnp.float32)
    emb = emb.at[pad_idx].set(0.0)   # padding_idx row is zero
    return {
        "embedding": emb,
        "w_ih": jax.random.uniform(ks[1], (hidden_dim, embedding_dim),
                                   jnp.float32, -kinv, kinv),
        "w_hh": jax.random.uniform(ks[2], (hidden_dim, hidden_dim),
                                   jnp.float32, -kinv, kinv),
        "b_ih": jax.random.uniform(ks[3], (hidden_dim,), jnp.float32, -kinv, kinv),
        "b_hh": jax.random.uniform(ks[4], (hidden_dim,), jnp.float32, -kinv, kinv),
        "w_fc": jax.random.uniform(ks[5], (output_dim, hidden_dim),
                                   jnp.float32, -kinv, kinv),
        "b_fc": jax.random.uniform(ks[6], (output_dim,), jnp.float32, -kinv, kinv),
    }


def prepare_params(params):
    """One-time preprocessing (call once, reuse every forward).

    Folds the embedding into the input projection (proj_table = E @ W_ih^T)
    and pads/transposes all operands to lane-dense 128-wide shapes, so the
    per-call path has no weight-prep XLA glue left.
    """
    V, _ = params["embedding"].shape
    H = params["w_hh"].shape[0]
    O = params["w_fc"].shape[0]
    V_p = _round_up(V, LANE)
    H_p = _round_up(H, LANE)
    O_p = _round_up(O, LANE)

    proj = params["embedding"] @ params["w_ih"].T          # (V, H); pad row -> 0
    return {
        "proj_t": _pad_to(proj, (V_p, H_p)),
        "w_hh_t": _pad_to(params["w_hh"].T, (H_p, H_p)),
        "b_rnn": _pad_to((params["b_ih"] + params["b_hh"])[None, :], (1, H_p)),
        "w_fc_t": _pad_to(params["w_fc"].T, (H_p, O_p)),
        "b_fc": _pad_to(params["b_fc"][None, :], (1, O_p)),
        "out_dim": int(O),
    }


@functools.partial(jax.jit, static_argnums=(7,))
def _binary_rnn_forward(text, lengths, proj_t, w_hh_t, b_rnn, w_fc_t, b_fc,
                        out_dim):
    T, B = text.shape
    ids = text.reshape(T * B, 1).astype(jnp.int32)          # t-major token ids
    len_col = lengths.astype(jnp.int32).reshape(B, 1)
    out = binary_rnn_pallas(ids, len_col, proj_t, w_hh_t, b_rnn, w_fc_t, b_fc)
    return out[:, :out_dim]


def binary_rnn_forward(text, text_length, prep):
    """text: (T_max, B) int32 token ids; text_length: (B,) ints."""
    lengths = jnp.asarray(text_length, jnp.int32)
    return _binary_rnn_forward(text, lengths, prep["proj_t"], prep["w_hh_t"],
                               prep["b_rnn"], prep["w_fc_t"], prep["b_fc"],
                               prep["out_dim"])


def binary_rnn_reference(text, text_length, params):
    """Pure-JAX reference reproducing PyTorch packed-RNN `output[-1]` semantics."""
    lengths = np.asarray(text_length)
    T_eff = int(lengths.max())
    emb = jnp.take(params["embedding"], text, axis=0)[:T_eff]          # (T_eff, B, E)
    B = text.shape[1]
    H = params["w_hh"].shape[0]

    def step(h, x_t):
        h = jnp.tanh(x_t @ params["w_ih"].T + params["b_ih"]
                     + h @ params["w_hh"].T + params["b_hh"])
        return h, None

    h0 = jnp.zeros((B, H), jnp.float32)
    h_last, _ = jax.lax.scan(step, h0, emb)
    # Rows shorter than T_eff are frozen at their own length in the packed RNN,
    # but output[-1] zero-fills them, so only max-length rows survive the mask.
    def gated_step(carry, inp):
        h, t = carry
        x_t = inp
        h_new = jnp.tanh(x_t @ params["w_ih"].T + params["b_ih"]
                         + h @ params["w_hh"].T + params["b_hh"])
        h = jnp.where((jnp.asarray(lengths) > t)[:, None], h_new, h)
        return (h, t + 1), None

    (h_last, _), _ = jax.lax.scan(gated_step, (h0, 0), emb)
    final = h_last * (jnp.asarray(lengths) == T_eff).astype(jnp.float32)[:, None]
    return jax.nn.sigmoid(final @ params["w_fc"].T + params["b_fc"])


# ----------------------------------- main -----------------------------------

if __name__ == "__main__":
    vocab_size, embedding_dim, hidden_dim, output_dim, pad_idx = 50, 16, 32, 1, 0
    T_max, B = 8, 8

    key = jax.random.PRNGKey(0)
    kp, kt = jax.random.split(key)
    params = init_params(kp, vocab_size, embedding_dim, hidden_dim,
                         output_dim, pad_idx)
    prep = prepare_params(params)     # one-time: fold embedding + pad/transpose

    # Deterministic batch: token ids in [1, vocab); pad beyond each length.
    # max(length)=7 < T_max=8 exercises the in-kernel per-row length gate.
    tokens = jax.random.randint(kt, (T_max, B), 1, vocab_size, dtype=jnp.int32)
    text_np = np.array(tokens)                        # writable host copy
    text_length = np.array([7, 6, 7, 5, 7, 7, 4, 7], dtype=np.int32)
    for b in range(B):
        text_np[text_length[b]:, b] = pad_idx
    text = jnp.asarray(text_np)

    out = jax.block_until_ready(binary_rnn_forward(text, text_length, prep))
    ref = jax.block_until_ready(binary_rnn_reference(text, text_length, params))
    np.testing.assert_allclose(np.asarray(out), np.asarray(ref),
                               rtol=1e-4, atol=1e-5)

    print("KERNEL_OK")
</pallas_src>

<mosaic_0001>
module attributes {stable_mosaic.version = 11 : i64} {
  func.func @rnn_fc_sigmoid_kernel(%arg0: memref<64x1xi32, #tpu.memory_space<vmem>>, %arg1: memref<8x1xi32, #tpu.memory_space<vmem>>, %arg2: memref<128x128xf32, #tpu.memory_space<vmem>>, %arg3: memref<128x128xf32, #tpu.memory_space<vmem>>, %arg4: memref<1x128xf32, #tpu.memory_space<vmem>>, %arg5: memref<128x128xf32, #tpu.memory_space<vmem>>, %arg6: memref<1x128xf32, #tpu.memory_space<vmem>>, %arg7: memref<8x128xf32, #tpu.memory_space<vmem>>) attributes {dimension_semantics = [], scalar_prefetch = 0 : i64, scratch_operands = 0 : i64, tpu.core_type = #tpu.core_type<tc>} {
    %c0 = arith.constant 0 : index
    %c0_0 = arith.constant 0 : index
    %0 = vector.load %arg0[%c0, %c0_0] : memref<64x1xi32, #tpu.memory_space<vmem>>, vector<64x1xi32>
    %1 = tpu.iota {dimensions = array<i32: 1>} : vector<64x128xi32>
    %2 = vector.broadcast %0 : vector<64x1xi32> to vector<64x128xi32>
    %3 = arith.cmpi eq, %1, %2 : vector<64x128xi32>
    %4 = arith.extui %3 : vector<64x128xi1> to vector<64x128xi32>
    %5 = arith.sitofp %4 : vector<64x128xi32> to vector<64x128xf32>
    %c0_1 = arith.constant 0 : index
    %c0_2 = arith.constant 0 : index
    %6 = vector.load %arg2[%c0_1, %c0_2] : memref<128x128xf32, #tpu.memory_space<vmem>>, vector<128x128xf32>
    %cst = arith.constant dense<0.000000e+00> : vector<64x128xf32>
    %7 = tpu.matmul %5, %6, %cst {dimension_numbers = #tpu.dot_dimension_numbers<[1], [0], [0], [1], [0, 0, 1, 1], [], []>} : vector<64x128xf32>, vector<128x128xf32>, vector<64x128xf32> -> vector<64x128xf32>
    %c0_3 = arith.constant 0 : index
    %c0_4 = arith.constant 0 : index
    %8 = vector.load %arg4[%c0_3, %c0_4] : memref<1x128xf32, #tpu.memory_space<vmem>>, vector<1x128xf32>
    %9 = vector.broadcast %8 : vector<1x128xf32> to vector<64x128xf32>
    %10 = arith.addf %7, %9 : vector<64x128xf32>
    %c0_5 = arith.constant 0 : index
    %c0_6 = arith.constant 0 : index
    %11 = vector.load %arg1[%c0_5, %c0_6] : memref<8x1xi32, #tpu.memory_space<vmem>>, vector<8x1xi32>
    %12 = arith.sitofp %11 : vector<8x1xi32> to vector<8x1xf32>
    %c0_7 = arith.constant 0 : index
    %c0_8 = arith.constant 0 : index
    %13 = vector.load %arg3[%c0_7, %c0_8] : memref<128x128xf32, #tpu.memory_space<vmem>>, vector<128x128xf32>
    %cst_9 = arith.constant 0.000000e+00 : f32
    %14 = vector.broadcast %cst_9 : f32 to vector<8x128xf32>
    %15 = vector.extract_strided_slice %10 {offsets = [0, 0], sizes = [8, 128], strides = [1, 1]} : vector<64x128xf32> to vector<8x128xf32>
    %cst_10 = arith.constant dense<0.000000e+00> : vector<8x128xf32>
    %16 = tpu.matmul %14, %13, %cst_10 {dimension_numbers = #tpu.dot_dimension_numbers<[1], [0], [0], [1], [0, 0, 1, 1], [], []>} : vector<8x128xf32>, vector<128x128xf32>, vector<8x128xf32> -> vector<8x128xf32>
    %17 = arith.addf %15, %16 : vector<8x128xf32>
    %18 = math.tanh %17 : vector<8x128xf32>
    %cst_11 = arith.constant 0.000000e+00 : f32
    %19 = vector.broadcast %cst_11 : f32 to vector<8x1xf32>
    %20 = arith.cmpf ogt, %12, %19 : vector<8x1xf32>
    %21 = vector.shape_cast %20 : vector<8x1xi1> to vector<8x1xi1>
    %22 = vector.broadcast %21 : vector<8x1xi1> to vector<8x128xi1>
    %23 = arith.select %22, %18, %14 : vector<8x128xi1>, vector<8x128xf32>
    %24 = vector.extract_strided_slice %10 {offsets = [8, 0], sizes = [8, 128], strides = [1, 1]} : vector<64x128xf32> to vector<8x128xf32>
    %cst_12 = arith.constant dense<0.000000e+00> : vector<8x128xf32>
    %25 = tpu.matmul %23, %13, %cst_12 {dimension_numbers = #tpu.dot_dimension_numbers<[1], [0], [0], [1], [0, 0, 1, 1], [], []>} : vector<8x128xf32>, vector<128x128xf32>, vector<8x128xf32> -> vector<8x128xf32>
    %26 = arith.addf %24, %25 : vector<8x128xf32>
    %27 = math.tanh %26 : vector<8x128xf32>
    %cst_13 = arith.constant 1.000000e+00 : f32
    %28 = vector.broadcast %cst_13 : f32 to vector<8x1xf32>
    %29 = arith.cmpf ogt, %12, %28 : vector<8x1xf32>
    %30 = vector.shape_cast %29 : vector<8x1xi1> to vector<8x1xi1>
    %31 = vector.broadcast %30 : vector<8x1xi1> to vector<8x128xi1>
    %32 = arith.select %31, %27, %23 : vector<8x128xi1>, vector<8x128xf32>
    %33 = vector.extract_strided_slice %10 {offsets = [16, 0], sizes = [8, 128], strides = [1, 1]} : vector<64x128xf32> to vector<8x128xf32>
    %cst_14 = arith.constant dense<0.000000e+00> : vector<8x128xf32>
    %34 = tpu.matmul %32, %13, %cst_14 {dimension_numbers = #tpu.dot_dimension_numbers<[1], [0], [0], [1], [0, 0, 1, 1], [], []>} : vector<8x128xf32>, vector<128x128xf32>, vector<8x128xf32> -> vector<8x128xf32>
    %35 = arith.addf %33, %34 : vector<8x128xf32>
    %36 = math.tanh %35 : vector<8x128xf32>
    %cst_15 = arith.constant 2.000000e+00 : f32
    %37 = vector.broadcast %cst_15 : f32 to vector<8x1xf32>
    %38 = arith.cmpf ogt, %12, %37 : vector<8x1xf32>
    %39 = vector.shape_cast %38 : vector<8x1xi1> to vector<8x1xi1>
    %40 = vector.broadcast %39 : vector<8x1xi1> to vector<8x128xi1>
    %41 = arith.select %40, %36, %32 : vector<8x128xi1>, vector<8x128xf32>
    %42 = vector.extract_strided_slice %10 {offsets = [24, 0], sizes = [8, 128], strides = [1, 1]} : vector<64x128xf32> to vector<8x128xf32>
    %cst_16 = arith.constant dense<0.000000e+00> : vector<8x128xf32>
    %43 = tpu.matmul %41, %13, %cst_16 {dimension_numbers = #tpu.dot_dimension_numbers<[1], [0], [0], [1], [0, 0, 1, 1], [], []>} : vector<8x128xf32>, vector<128x128xf32>, vector<8x128xf32> -> vector<8x128xf32>
    %44 = arith.addf %42, %43 : vector<8x128xf32>
    %45 = math.tanh %44 : vector<8x128xf32>
    %cst_17 = arith.constant 3.000000e+00 : f32
    %46 = vector.broadcast %cst_17 : f32 to vector<8x1xf32>
    %47 = arith.cmpf ogt, %12, %46 : vector<8x1xf32>
    %48 = vector.shape_cast %47 : vector<8x1xi1> to vector<8x1xi1>
    %49 = vector.broadcast %48 : vector<8x1xi1> to vector<8x128xi1>
    %50 = arith.select %49, %45, %41 : vector<8x128xi1>, vector<8x128xf32>
    %51 = vector.extract_strided_slice %10 {offsets = [32, 0], sizes = [8, 128], strides = [1, 1]} : vector<64x128xf32> to vector<8x128xf32>
    %cst_18 = arith.constant dense<0.000000e+00> : vector<8x128xf32>
    %52 = tpu.matmul %50, %13, %cst_18 {dimension_numbers = #tpu.dot_dimension_numbers<[1], [0], [0], [1], [0, 0, 1, 1], [], []>} : vector<8x128xf32>, vector<128x128xf32>, vector<8x128xf32> -> vector<8x128xf32>
    %53 = arith.addf %51, %52 : vector<8x128xf32>
    %54 = math.tanh %53 : vector<8x128xf32>
    %cst_19 = arith.constant 4.000000e+00 : f32
    %55 = vector.broadcast %cst_19 : f32 to vector<8x1xf32>
    %56 = arith.cmpf ogt, %12, %55 : vector<8x1xf32>
    %57 = vector.shape_cast %56 : vector<8x1xi1> to vector<8x1xi1>
    %58 = vector.broadcast %57 : vector<8x1xi1> to vector<8x128xi1>
    %59 = arith.select %58, %54, %50 : vector<8x128xi1>, vector<8x128xf32>
    %60 = vector.extract_strided_slice %10 {offsets = [40, 0], sizes = [8, 128], strides = [1, 1]} : vector<64x128xf32> to vector<8x128xf32>
    %cst_20 = arith.constant dense<0.000000e+00> : vector<8x128xf32>
    %61 = tpu.matmul %59, %13, %cst_20 {dimension_numbers = #tpu.dot_dimension_numbers<[1], [0], [0], [1], [0, 0, 1, 1], [], []>} : vector<8x128xf32>, vector<128x128xf32>, vector<8x128xf32> -> vector<8x128xf32>
    %62 = arith.addf %60, %61 : vector<8x128xf32>
    %63 = math.tanh %62 : vector<8x128xf32>
    %cst_21 = arith.constant 5.000000e+00 : f32
    %64 = vector.broadcast %cst_21 : f32 to vector<8x1xf32>
    %65 = arith.cmpf ogt, %12, %64 : vector<8x1xf32>
    %66 = vector.shape_cast %65 : vector<8x1xi1> to vector<8x1xi1>
    %67 = vector.broadcast %66 : vector<8x1xi1> to vector<8x128xi1>
    %68 = arith.select %67, %63, %59 : vector<8x128xi1>, vector<8x128xf32>
    %69 = vector.extract_strided_slice %10 {offsets = [48, 0], sizes = [8, 128], strides = [1, 1]} : vector<64x128xf32> to vector<8x128xf32>
    %cst_22 = arith.constant dense<0.000000e+00> : vector<8x128xf32>
    %70 = tpu.matmul %68, %13, %cst_22 {dimension_numbers = #tpu.dot_dimension_numbers<[1], [0], [0], [1], [0, 0, 1, 1], [], []>} : vector<8x128xf32>, vector<128x128xf32>, vector<8x128xf32> -> vector<8x128xf32>
    %71 = arith.addf %69, %70 : vector<8x128xf32>
    %72 = math.tanh %71 : vector<8x128xf32>
    %cst_23 = arith.constant 6.000000e+00 : f32
    %73 = vector.broadcast %cst_23 : f32 to vector<8x1xf32>
    %74 = arith.cmpf ogt, %12, %73 : vector<8x1xf32>
    %75 = vector.shape_cast %74 : vector<8x1xi1> to vector<8x1xi1>
    %76 = vector.broadcast %75 : vector<8x1xi1> to vector<8x128xi1>
    %77 = arith.select %76, %72, %68 : vector<8x128xi1>, vector<8x128xf32>
    %78 = vector.extract_strided_slice %10 {offsets = [56, 0], sizes = [8, 128], strides = [1, 1]} : vector<64x128xf32> to vector<8x128xf32>
    %cst_24 = arith.constant dense<0.000000e+00> : vector<8x128xf32>
    %79 = tpu.matmul %77, %13, %cst_24 {dimension_numbers = #tpu.dot_dimension_numbers<[1], [0], [0], [1], [0, 0, 1, 1], [], []>} : vector<8x128xf32>, vector<128x128xf32>, vector<8x128xf32> -> vector<8x128xf32>
    %80 = arith.addf %78, %79 : vector<8x128xf32>
    %81 = math.tanh %80 : vector<8x128xf32>
    %cst_25 = arith.constant 7.000000e+00 : f32
    %82 = vector.broadcast %cst_25 : f32 to vector<8x1xf32>
    %83 = arith.cmpf ogt, %12, %82 : vector<8x1xf32>
    %84 = vector.shape_cast %83 : vector<8x1xi1> to vector<8x1xi1>
    %85 = vector.broadcast %84 : vector<8x1xi1> to vector<8x128xi1>
    %86 = arith.select %85, %81, %77 : vector<8x128xi1>, vector<8x128xf32>
    %cst_26 = arith.constant dense<0xFF800000> : vector<1xf32>
    %87 = vector.multi_reduction <maximumf>, %12, %cst_26 [0] : vector<8x1xf32> to vector<1xf32>
    %88 = vector.shape_cast %87 : vector<1xf32> to vector<1x1xf32>
    %89 = vector.broadcast %88 : vector<1x1xf32> to vector<8x1xf32>
    %90 = arith.cmpf oeq, %12, %89 : vector<8x1xf32>
    %cst_27 = arith.constant 0.000000e+00 : f32
    %91 = vector.shape_cast %90 : vector<8x1xi1> to vector<8x1xi1>
    %92 = vector.broadcast %91 : vector<8x1xi1> to vector<8x128xi1>
    %93 = vector.broadcast %cst_27 : f32 to vector<8x128xf32>
    %94 = arith.select %92, %86, %93 : vector<8x128xi1>, vector<8x128xf32>
    %c0_28 = arith.constant 0 : index
    %c0_29 = arith.constant 0 : index
    %95 = vector.load %arg5[%c0_28, %c0_29] : memref<128x128xf32, #tpu.memory_space<vmem>>, vector<128x128xf32>
    %cst_30 = arith.constant dense<0.000000e+00> : vector<8x128xf32>
    %96 = tpu.matmul %94, %95, %cst_30 {dimension_numbers = #tpu.dot_dimension_numbers<[1], [0], [0], [1], [0, 0, 1, 1], [], []>} : vector<8x128xf32>, vector<128x128xf32>, vector<8x128xf32> -> vector<8x128xf32>
    %c0_31 = arith.constant 0 : index
    %c0_32 = arith.constant 0 : index
    %97 = vector.load %arg6[%c0_31, %c0_32] : memref<1x128xf32, #tpu.memory_space<vmem>>, vector<1x128xf32>
    %98 = vector.broadcast %97 : vector<1x128xf32> to vector<8x128xf32>
    %99 = arith.addf %96, %98 : vector<8x128xf32>
    %100 = arith.negf %99 : vector<8x128xf32>
    %101 = math.exp %100 : vector<8x128xf32>
    %cst_33 = arith.constant 1.000000e+00 : f32
    %102 = vector.broadcast %cst_33 : f32 to vector<8x128xf32>
    %103 = arith.addf %102, %101 : vector<8x128xf32>
    %104 = arith.divf %102, %103 : vector<8x128xf32>
    %c0_34 = arith.constant 0 : index
    %c0_35 = arith.constant 0 : index
    %105 = vector.load %arg7[%c0_34, %c0_35] : memref<8x128xf32, #tpu.memory_space<vmem>>, vector<8x128xf32>
    tpu.vector_store %arg7[%c0_34, %c0_35], %104 {strides = array<i32>} : memref<8x128xf32, #tpu.memory_space<vmem>>, vector<8x128xf32>,
    return
  }
}

</mosaic_0001>

<llo_original>
// kernel: _binary_rnn_forward.1
$region0: #{_binary_rnn_forward.1}
  #allocation0 [shape = 'u32[]', space=smem, size = 0x4, offset = 0x4, fixed_abs, tag = 'smem constant byte address 0x4 - core index']
  #allocation1 [shape = 'u32[72,128]{1,0:T(1,128)}', space=vmem, size = 0x9000, scoped, tag = 'internal scratch']
  %s0 = inlined_call_operand.vmem [shape: s32[64,1], index: 0, kind: input, shape index: {}]
  %s1 = inlined_call_operand.vmem [shape: s32[8,1], index: 1, kind: input, shape index: {}]
  %s2 = inlined_call_operand.hbm [shape: f32[128,128], index: 2, kind: input, shape index: {}]
  %s3 = inlined_call_operand.hbm [shape: f32[128,128], index: 3, kind: input, shape index: {}]
  %s4 = inlined_call_operand.vmem [shape: f32[1,128], index: 4, kind: input, shape index: {}]
  %s5 = inlined_call_operand.hbm [shape: f32[128,128], index: 5, kind: input, shape index: {}]
  %s6 = inlined_call_operand.vmem [shape: f32[1,128], index: 6, kind: input, shape index: {}]
  %s7 = inlined_call_operand.vmem [shape: f32[8,128], index: 7, kind: output, shape index: {}]
  %s8 = sld [smem:[#allocation0]]
  $region50: #{_binary_rnn_forward.1} parent=0
    _
  %s10 = ssub.s32 1, %s8
  %s11 = scalar_select 0, %s10, %s8
  $region1: #{_binary_rnn_forward.1} parent=0
    #allocation2 [shape = 'u8[65536]{0}', space=vmem, size = 0x10000, scoped, tag = 'input window, operand 2, single buffered']
    #allocation3 [shape = 's32[1]{0}', space=sflag, size = 0x4, scoped, tag = 'scoped memory for _binary_rnn_forward.1']
    #allocation4 [shape = 'u8[65536]{0}', space=vmem, size = 0x10000, scoped, tag = 'input window, operand 3, single buffered']
    #allocation5 [shape = 's32[1]{0}', space=sflag, size = 0x4, scoped, tag = 'scoped memory for _binary_rnn_forward.1']
    #allocation6 [shape = 'u8[65536]{0}', space=vmem, size = 0x10000, scoped, tag = 'input window, operand 5, single buffered']
    %12 = vsyncpa [#allocation3], 0
    %13 = vsyncpa [#allocation5], 0
    // Predicated region
    $region2: #{_binary_rnn_forward.1} parent=1 // pred_check
      _
    $region3: #{_binary_rnn_forward.1} parent=1 // pred_check_branch
      %15 = sbr.rel (0) target = $region5
    $region4: #{_binary_rnn_forward.1} parent=1 // pred_region
      _
    $region5: #{_binary_rnn_forward.1} parent=1 // pred_fallthru
      _
    // Predicated region
    $region6: #{_binary_rnn_forward.1} parent=1 // pred_check
      _
    $region7: #{_binary_rnn_forward.1} parent=1 // pred_check_branch
      %17 = sbr.rel (0) target = $region9
    $region8: #{_binary_rnn_forward.1} parent=1 // pred_region
      _
    $region9: #{_binary_rnn_forward.1} parent=1 // pred_fallthru
      _
    // Predicated region
    $region10: #{_binary_rnn_forward.1} parent=1 // pred_check
      _
    $region11: #{_binary_rnn_forward.1} parent=1 // pred_check_branch
      %19 = sbr.rel (0) target = $region13
    $region12: #{_binary_rnn_forward.1} parent=1 // pred_region
      %21 = vsyncadd [#allocation3], 0
      %s22 = sshll.u32 %s2, 4
      %s23 = int_to_ptr.hbm [resolvable:$true] %s22
      %s24 = sshll.u32 [#allocation2], 4
      %s25 = int_to_ptr.vmem [resolvable:$true] %s24
      %30 = dma.hbm_to_vmem [thread:$0]  %s23, 2048, %s25, [#allocation3], 128, 128, 8
    $region13: #{_binary_rnn_forward.1} parent=1 // pred_fallthru
      _
    // Predicated region
    $region14: #{_binary_rnn_forward.1} parent=1 // pred_check
      _
    $region15: #{_binary_rnn_forward.1} parent=1 // pred_check_branch
      %32 = sbr.rel (0) target = $region17
    $region16: #{_binary_rnn_forward.1} parent=1 // pred_region
      %34 = vsyncadd [#allocation5], 0
      %s35 = sshll.u32 %s3, 4
      %s36 = int_to_ptr.hbm [resolvable:$true] %s35
      %s37 = sshll.u32 [#allocation4], 4
      %s38 = int_to_ptr.vmem [resolvable:$true] %s37
      %43 = dma.hbm_to_vmem [thread:$0]  %s36, 2048, %s38, [#allocation5], 128, 128, 8
    $region17: #{_binary_rnn_forward.1} parent=1 // pred_fallthru
      _
    // Predicated region
    $region18: #{_binary_rnn_forward.1} parent=1 // pred_check
      _
    $region19: #{_binary_rnn_forward.1} parent=1 // pred_check_branch
      %45 = sbr.rel (0) target = $region21
    $region20: #{_binary_rnn_forward.1} parent=1 // pred_region
      _
    $region21: #{_binary_rnn_forward.1} parent=1 // pred_fallthru
      _
    // Predicated region
    $region22: #{_binary_rnn_forward.1} parent=1 // pred_check
      _
    $region23: #{_binary_rnn_forward.1} parent=1 // pred_check_branch
      %47 = sbr.rel (0) target = $region25
    $region24: #{_binary_rnn_forward.1} parent=1 // pred_region
      %49 = vsyncadd [#allocation5], 0
      %s50 = sshll.u32 %s5, 4
      %s51 = int_to_ptr.hbm [resolvable:$true] %s50
      %s52 = sshll.u32 [#allocation6], 4
      %s53 = int_to_ptr.vmem [resolvable:$true] %s52
      %58 = dma.hbm_to_vmem [thread:$0]  %s51, 2048, %s53, [#allocation5], 128, 128, 8
    $region25: #{_binary_rnn_forward.1} parent=1 // pred_fallthru
      _
    // Predicated region
    $region26: #{_binary_rnn_forward.1} parent=1 // pred_check
      _
    $region27: #{_binary_rnn_forward.1} parent=1 // pred_check_branch
      %60 = sbr.rel (0) target = $region29
    $region28: #{_binary_rnn_forward.1} parent=1 // pred_region
      _
    $region29: #{_binary_rnn_forward.1} parent=1 // pred_fallthru
      _
    // Predicated region
    $region30: #{_binary_rnn_forward.1} parent=1 // pred_check
      _
    $region31: #{_binary_rnn_forward.1} parent=1 // pred_check_branch
      %62 = sbr.rel (0) target = $region33
    $region32: #{_binary_rnn_forward.1} parent=1 // pred_region
      %64 = dma.done [#allocation3], 2048
    $region33: #{_binary_rnn_forward.1} parent=1 // pred_fallthru
      _
    // Predicated region
    $region34: #{_binary_rnn_forward.1} parent=1 // pred_check
      _
    $region35: #{_binary_rnn_forward.1} parent=1 // pred_check_branch
      %66 = sbr.rel (0) target = $region37
    $region36: #{_binary_rnn_forward.1} parent=1 // pred_region
      %68 = dma.done [#allocation5], 2048
    $region37: #{_binary_rnn_forward.1} parent=1 // pred_fallthru
      _
    // Predicated region
    $region38: #{_binary_rnn_forward.1} parent=1 // pred_check
      _
    $region39: #{_binary_rnn_forward.1} parent=1 // pred_check_branch
      %70 = sbr.rel (0) target = $region41
    $region40: #{_binary_rnn_forward.1} parent=1 // pred_region
      %72 = dma.done [#allocation5], 2048
    $region41: #{_binary_rnn_forward.1} parent=1 // pred_fallthru
      _
    %v73 = vld [vmem:[%s0] sm:$0xff]
    %v74 = vld [vmem:[%s0 + $0x8] sm:$0xff]
    %v75 = vld [vmem:[%s0 + $0x10] sm:$0xff]
    %v76 = vld [vmem:[%s0 + $0x18] sm:$0xff]
    %v77 = vld [vmem:[%s0 + $0x20] sm:$0xff]
    %v78 = vld [vmem:[%s0 + $0x28] sm:$0xff]
    %v79 = vld [vmem:[%s0 + $0x30] sm:$0xff]
    %v80 = vld [vmem:[%s0 + $0x38] sm:$0xff]
    %v81 = vlaneseq
    %v82 = vand.u32 %v81, 127
    %83 = vset.pattern.permute.xlu0 0
    %84 = vperm.xlu0 %83, %v73
    %v85 = vpop.permute.xlu0 %84
    %86 = vset.pattern.permute.xlu0 0
    %87 = vperm.xlu0 %86, %v74
    %v88 = vpop.permute.xlu0 %87
    %89 = vset.pattern.permute.xlu0 0
    %90 = vperm.xlu0 %89, %v75
    %v91 = vpop.permute.xlu0 %90
    %92 = vset.pattern.permute.xlu0 0
    %93 = vperm.xlu0 %92, %v76
    %v94 = vpop.permute.xlu0 %93
    %95 = vset.pattern.permute.xlu0 0
    %96 = vperm.xlu0 %95, %v77
    %v97 = vpop.permute.xlu0 %96
    %98 = vset.pattern.permute.xlu0 0
    %99 = vperm.xlu0 %98, %v78
    %v100 = vpop.permute.xlu0 %99
    %101 = vset.pattern.permute.xlu0 0
    %102 = vperm.xlu0 %101, %v79
    %v103 = vpop.permute.xlu0 %102
    %104 = vset.pattern.permute.xlu0 0
    %105 = vperm.xlu0 %104, %v80
    %v106 = vpop.permute.xlu0 %105
    %vm107 = vcmp.eq.s32.totalorder %v82, %v85
    %vm108 = vcmp.eq.s32.totalorder %v82, %v88
    %vm109 = vcmp.eq.s32.totalorder %v82, %v91
    %vm110 = vcmp.eq.s32.totalorder %v82, %v94
    %vm111 = vcmp.eq.s32.totalorder %v82, %v97
    %vm112 = vcmp.eq.s32.totalorder %v82, %v100
    %vm113 = vcmp.eq.s32.totalorder %v82, %v103
    %vm114 = vcmp.eq.s32.totalorder %v82, %v106
    %v115 = vsel %vm107, 1, 0
    %v116 = vsel %vm108, 1, 0
    %v117 = vsel %vm109, 1, 0
    %v118 = vsel %vm110, 1, 0
    %v119 = vsel %vm111, 1, 0
    %v120 = vsel %vm112, 1, 0
    %v121 = vsel %vm113, 1, 0
    %v122 = vsel %vm114, 1, 0
    %v123 = vcvt.s32.f32 %v115
    %v124 = vcvt.s32.f32 %v116
    %v125 = vcvt.s32.f32 %v117
    %v126 = vcvt.s32.f32 %v118
    %v127 = vcvt.s32.f32 %v119
    %v128 = vcvt.s32.f32 %v120
    %v129 = vcvt.s32.f32 %v121
    %v130 = vcvt.s32.f32 %v122
    %v131 = vld [vmem:[#allocation2] sm:$0xff]
    %v132 = vld [vmem:[#allocation2 + $0x8] sm:$0xff]
    %v133 = vld [vmem:[#allocation2 + $0x10] sm:$0xff]
    %v134 = vld [vmem:[#allocation2 + $0x18] sm:$0xff]
    %v135 = vld [vmem:[#allocation2 + $0x20] sm:$0xff]
    %v136 = vld [vmem:[#allocation2 + $0x28] sm:$0xff]
    %v137 = vld [vmem:[#allocation2 + $0x30] sm:$0xff]
    %v138 = vld [vmem:[#allocation2 + $0x38] sm:$0xff]
    %v139 = vld [vmem:[#allocation2 + $0x40] sm:$0xff]
    %v140 = vld [vmem:[#allocation2 + $0x48] sm:$0xff]
    %v141 = vld [vmem:[#allocation2 + $0x50] sm:$0xff]
    %v142 = vld [vmem:[#allocation2 + $0x58] sm:$0xff]
    %v143 = vld [vmem:[#allocation2 + $0x60] sm:$0xff]
    %v144 = vld [vmem:[#allocation2 + $0x68] sm:$0xff]
    %v145 = vld [vmem:[#allocation2 + $0x70] sm:$0xff]
    %v146 = vld [vmem:[#allocation2 + $0x78] sm:$0xff]
    %v147 = vld [vmem:[%s4] sm:$0x1]
    %v149 = vperm.slane %v147, 0
    %151 = vmatpush.msra.mxu0 %v146
    %152 = vmatpush.msra.mxu0 %v145
    %153 = vmatpush.msra.mxu0 %v144
    %154 = vmatpush.msra.mxu0 %v143
    %155 = vmatpush.msra.mxu0 %v142
    %156 = vmatpush.msra.mxu0 %v141
    %157 = vmatpush.msra.mxu0 %v140
    %158 = vmatpush.msra.mxu0 %v139
    %159 = vmatpush.msra.mxu0 %v138
    %160 = vmatpush.msra.mxu0 %v137
    %161 = vmatpush.msra.mxu0 %v136
    %162 = vmatpush.msra.mxu0 %v135
    %163 = vmatpush.msra.mxu0 %v134
    %164 = vmatpush.msra.mxu0 %v133
    %165 = vmatpush.msra.mxu0 %v132
    %166 = vmatpush.msra.mxu0 %v131
    %167 = vmatmul.f32.gmra.mxu0 %v123
    %v168 = vpop.f32.mrf.mxu0
    %v169 = vadd.f32 %v149, %v168
    %170 = vmatmul.f32.gmra.mxu0 %v124
    %v171 = vpop.f32.mrf.mxu0
    %v172 = vadd.f32 %v149, %v171
    %173 = vmatmul.f32.gmra.mxu0 %v125
    %v174 = vpop.f32.mrf.mxu0
    %v175 = vadd.f32 %v149, %v174
    %176 = vmatmul.f32.gmra.mxu0 %v126
    %v177 = vpop.f32.mrf.mxu0
    %v178 = vadd.f32 %v149, %v177
    %179 = vmatmul.f32.gmra.mxu0 %v127
    %v180 = vpop.f32.mrf.mxu0
    %v181 = vadd.f32 %v149, %v180
    %182 = vmatmul.f32.gmra.mxu0 %v128
    %v183 = vpop.f32.mrf.mxu0
    %v184 = vadd.f32 %v149, %v183
    %185 = vmatmul.f32.gmra.mxu0 %v129
    %v186 = vpop.f32.mrf.mxu0
    %v187 = vadd.f32 %v149, %v186
    %188 = vmatmul.f32.gmra.mxu0 %v130
    %v189 = vpop.f32.mrf.mxu0
    %v190 = vadd.f32 %v149, %v189
    %191 = vdwg.mxu0
    %v192 = vld [vmem:[%s1] sm:$0xff]
    %v193 = vcvt.s32.f32 %v192
    %v194 = vld [vmem:[#allocation4] sm:$0xff]
    %v195 = vld [vmem:[#allocation4 + $0x8] sm:$0xff]
    %v196 = vld [vmem:[#allocation4 + $0x10] sm:$0xff]
    %v197 = vld [vmem:[#allocation4 + $0x18] sm:$0xff]
    %v198 = vld [vmem:[#allocation4 + $0x20] sm:$0xff]
    %v199 = vld [vmem:[#allocation4 + $0x28] sm:$0xff]
    %v200 = vld [vmem:[#allocation4 + $0x30] sm:$0xff]
    %v201 = vld [vmem:[#allocation4 + $0x38] sm:$0xff]
    %v202 = vld [vmem:[#allocation4 + $0x40] sm:$0xff]
    %v203 = vld [vmem:[#allocation4 + $0x48] sm:$0xff]
    %v204 = vld [vmem:[#allocation4 + $0x50] sm:$0xff]
    %v205 = vld [vmem:[#allocation4 + $0x58] sm:$0xff]
    %v206 = vld [vmem:[#allocation4 + $0x60] sm:$0xff]
    %v207 = vld [vmem:[#allocation4 + $0x68] sm:$0xff]
    %v208 = vld [vmem:[#allocation4 + $0x70] sm:$0xff]
    %v209 = vld [vmem:[#allocation4 + $0x78] sm:$0xff]
    %210 = vmatpush.msra.mxu0 %v209
    %211 = vmatpush.msra.mxu0 %v208
    %212 = vmatpush.msra.mxu0 %v207
    %213 = vmatpush.msra.mxu0 %v206
    %214 = vmatpush.msra.mxu0 %v205
    %215 = vmatpush.msra.mxu0 %v204
    %216 = vmatpush.msra.mxu0 %v203
    %217 = vmatpush.msra.mxu0 %v202
    %218 = vmatpush.msra.mxu0 %v201
    %219 = vmatpush.msra.mxu0 %v200
    %220 = vmatpush.msra.mxu0 %v199
    %221 = vmatpush.msra.mxu0 %v198
    %222 = vmatpush.msra.mxu0 %v197
    %223 = vmatpush.msra.mxu0 %v196
    %224 = vmatpush.msra.mxu0 %v195
    %225 = vmatpush.msra.mxu0 %v194
    %226 = vmatmul.f32.gmra.mxu0 0.0
    %v227 = vpop.f32.mrf.mxu0
    %v228 = vadd.f32 0.0, %v227
    %229 = vdwg.mxu0
    %v230 = vadd.f32 %v169, %v228
    %v231 = vtanh.pop %v230
    %vm232 = vcmp.gt.f32.partialorder %v193, 0.0
    %v233 = vsel %vm232, 1, 0
    %234 = vset.pattern.permute.xlu0 0
    %235 = vperm.xlu0 %234, %v233
    %v236 = vpop.permute.xlu0 %235
    %vm237 = vcmp.eq.s32.totalorder %v236, 1
    %v238 = vsel %vm237, %v231, 0.0
    %239 = vmatpush.msra.mxu0 %v209
    %240 = vmatpush.msra.mxu0 %v208
    %241 = vmatpush.msra.mxu0 %v207
    %242 = vmatpush.msra.mxu0 %v206
    %243 = vmatpush.msra.mxu0 %v205
    %244 = vmatpush.msra.mxu0 %v204
    %245 = vmatpush.msra.mxu0 %v203
    %246 = vmatpush.msra.mxu0 %v202
    %247 = vmatpush.msra.mxu0 %v201
    %248 = vmatpush.msra.mxu0 %v200
    %249 = vmatpush.msra.mxu0 %v199
    %250 = vmatpush.msra.mxu0 %v198
    %251 = vmatpush.msra.mxu0 %v197
    %252 = vmatpush.msra.mxu0 %v196
    %253 = vmatpush.msra.mxu0 %v195
    %254 = vmatpush.msra.mxu0 %v194
    %255 = vmatmul.f32.gmra.mxu0 %v238
    %v256 = vpop.f32.mrf.mxu0
    %v257 = vadd.f32 0.0, %v256
    %258 = vdwg.mxu0
    %v259 = vadd.f32 %v172, %v257
    %v260 = vtanh.pop %v259
    %vm261 = vcmp.gt.f32.partialorder %v193, 1.0
    %v262 = vsel %vm261, 1, 0
    %263 = vset.pattern.permute.xlu0 0
    %264 = vperm.xlu0 %263, %v262
    %v265 = vpop.permute.xlu0 %264
    %vm266 = vcmp.eq.s32.totalorder %v265, 1
    %v267 = vsel %vm266, %v260, %v238
    %268 = vmatpush.msra.mxu0 %v209
    %269 = vmatpush.msra.mxu0 %v208
    %270 = vmatpush.msra.mxu0 %v207
    %271 = vmatpush.msra.mxu0 %v206
    %272 = vmatpush.msra.mxu0 %v205
    %273 = vmatpush.msra.mxu0 %v204
    %274 = vmatpush.msra.mxu0 %v203
    %275 = vmatpush.msra.mxu0 %v202
    %276 = vmatpush.msra.mxu0 %v201
    %277 = vmatpush.msra.mxu0 %v200
    %278 = vmatpush.msra.mxu0 %v199
    %279 = vmatpush.msra.mxu0 %v198
    %280 = vmatpush.msra.mxu0 %v197
    %281 = vmatpush.msra.mxu0 %v196
    %282 = vmatpush.msra.mxu0 %v195
    %283 = vmatpush.msra.mxu0 %v194
    %284 = vmatmul.f32.gmra.mxu0 %v267
    %v285 = vpop.f32.mrf.mxu0
    %v286 = vadd.f32 0.0, %v285
    %287 = vdwg.mxu0
    %v288 = vadd.f32 %v175, %v286
    %v289 = vtanh.pop %v288
    %vm290 = vcmp.gt.f32.partialorder %v193, 2.0
    %v291 = vsel %vm290, 1, 0
    %292 = vset.pattern.permute.xlu0 0
    %293 = vperm.xlu0 %292, %v291
    %v294 = vpop.permute.xlu0 %293
    %vm295 = vcmp.eq.s32.totalorder %v294, 1
    %v296 = vsel %vm295, %v289, %v267
    %297 = vmatpush.msra.mxu0 %v209
    %298 = vmatpush.msra.mxu0 %v208
    %299 = vmatpush.msra.mxu0 %v207
    %300 = vmatpush.msra.mxu0 %v206
    %301 = vmatpush.msra.mxu0 %v205
    %302 = vmatpush.msra.mxu0 %v204
    %303 = vmatpush.msra.mxu0 %v203
    %304 = vmatpush.msra.mxu0 %v202
    %305 = vmatpush.msra.mxu0 %v201
    %306 = vmatpush.msra.mxu0 %v200
    %307 = vmatpush.msra.mxu0 %v199
    %308 = vmatpush.msra.mxu0 %v198
    %309 = vmatpush.msra.mxu0 %v197
    %310 = vmatpush.msra.mxu0 %v196
    %311 = vmatpush.msra.mxu0 %v195
    %312 = vmatpush.msra.mxu0 %v194
    %313 = vmatmul.f32.gmra.mxu0 %v296
    %v314 = vpop.f32.mrf.mxu0
    %v315 = vadd.f32 0.0, %v314
    %316 = vdwg.mxu0
    %v317 = vadd.f32 %v178, %v315
    %v318 = vtanh.pop %v317
    %vm319 = vcmp.gt.f32.partialorder %v193, 3.0
    %v320 = vsel %vm319, 1, 0
    %321 = vset.pattern.permute.xlu0 0
    %322 = vperm.xlu0 %321, %v320
    %v323 = vpop.permute.xlu0 %322
    %vm324 = vcmp.eq.s32.totalorder %v323, 1
    %v325 = vsel %vm324, %v318, %v296
    %326 = vmatpush.msra.mxu0 %v209
    %327 = vmatpush.msra.mxu0 %v208
    %328 = vmatpush.msra.mxu0 %v207
    %329 = vmatpush.msra.mxu0 %v206
    %330 = vmatpush.msra.mxu0 %v205
    %331 = vmatpush.msra.mxu0 %v204
    %332 = vmatpush.msra.mxu0 %v203
    %333 = vmatpush.msra.mxu0 %v202
    %334 = vmatpush.msra.mxu0 %v201
    %335 = vmatpush.msra.mxu0 %v200
    %336 = vmatpush.msra.mxu0 %v199
    %337 = vmatpush.msra.mxu0 %v198
    %338 = vmatpush.msra.mxu0 %v197
    %339 = vmatpush.msra.mxu0 %v196
    %340 = vmatpush.msra.mxu0 %v195
    %341 = vmatpush.msra.mxu0 %v194
    %342 = vmatmul.f32.gmra.mxu0 %v325
    %v343 = vpop.f32.mrf.mxu0
    %v344 = vadd.f32 0.0, %v343
    %345 = vdwg.mxu0
    %v346 = vadd.f32 %v181, %v344
    %v347 = vtanh.pop %v346
    %vm348 = vcmp.gt.f32.partialorder %v193, 4.0
    %v349 = vsel %vm348, 1, 0
    %350 = vset.pattern.permute.xlu0 0
    %351 = vperm.xlu0 %350, %v349
    %v352 = vpop.permute.xlu0 %351
    %vm353 = vcmp.eq.s32.totalorder %v352, 1
    %v354 = vsel %vm353, %v347, %v325
    %355 = vmatpush.msra.mxu0 %v209
    %356 = vmatpush.msra.mxu0 %v208
    %357 = vmatpush.msra.mxu0 %v207
    %358 = vmatpush.msra.mxu0 %v206
    %359 = vmatpush.msra.mxu0 %v205
    %360 = vmatpush.msra.mxu0 %v204
    %361 = vmatpush.msra.mxu0 %v203
    %362 = vmatpush.msra.mxu0 %v202
    %363 = vmatpush.msra.mxu0 %v201
    %364 = vmatpush.msra.mxu0 %v200
    %365 = vmatpush.msra.mxu0 %v199
    %366 = vmatpush.msra.mxu0 %v198
    %367 = vmatpush.msra.mxu0 %v197
    %368 = vmatpush.msra.mxu0 %v196
    %369 = vmatpush.msra.mxu0 %v195
    %370 = vmatpush.msra.mxu0 %v194
    %371 = vmatmul.f32.gmra.mxu0 %v354
    %v372 = vpop.f32.mrf.mxu0
    %v373 = vadd.f32 0.0, %v372
    %374 = vdwg.mxu0
    %v375 = vadd.f32 %v184, %v373
    %v376 = vtanh.pop %v375
    %vm377 = vcmp.gt.f32.partialorder %v193, 5.0
    %v378 = vsel %vm377, 1, 0
    %379 = vset.pattern.permute.xlu0 0
    %380 = vperm.xlu0 %379, %v378
    %v381 = vpop.permute.xlu0 %380
    %vm382 = vcmp.eq.s32.totalorder %v381, 1
    %v383 = vsel %vm382, %v376, %v354
    %384 = vmatpush.msra.mxu0 %v209
    %385 = vmatpush.msra.mxu0 %v208
    %386 = vmatpush.msra.mxu0 %v207
    %387 = vmatpush.msra.mxu0 %v206
    %388 = vmatpush.msra.mxu0 %v205
    %389 = vmatpush.msra.mxu0 %v204
    %390 = vmatpush.msra.mxu0 %v203
    %391 = vmatpush.msra.mxu0 %v202
    %392 = vmatpush.msra.mxu0 %v201
    %393 = vmatpush.msra.mxu0 %v200
    %394 = vmatpush.msra.mxu0 %v199
    %395 = vmatpush.msra.mxu0 %v198
    %396 = vmatpush.msra.mxu0 %v197
    %397 = vmatpush.msra.mxu0 %v196
    %398 = vmatpush.msra.mxu0 %v195
    %399 = vmatpush.msra.mxu0 %v194
    %400 = vmatmul.f32.gmra.mxu0 %v383
    %v401 = vpop.f32.mrf.mxu0
    %v402 = vadd.f32 0.0, %v401
    %403 = vdwg.mxu0
    %v404 = vadd.f32 %v187, %v402
    %v405 = vtanh.pop %v404
    %vm406 = vcmp.gt.f32.partialorder %v193, 6.0
    %v407 = vsel %vm406, 1, 0
    %408 = vset.pattern.permute.xlu0 0
    %409 = vperm.xlu0 %408, %v407
    %v410 = vpop.permute.xlu0 %409
    %vm411 = vcmp.eq.s32.totalorder %v410, 1
    %v412 = vsel %vm411, %v405, %v383
    %413 = vmatpush.msra.mxu0 %v209
    %414 = vmatpush.msra.mxu0 %v208
    %415 = vmatpush.msra.mxu0 %v207
    %416 = vmatpush.msra.mxu0 %v206
    %417 = vmatpush.msra.mxu0 %v205
    %418 = vmatpush.msra.mxu0 %v204
    %419 = vmatpush.msra.mxu0 %v203
    %420 = vmatpush.msra.mxu0 %v202
    %421 = vmatpush.msra.mxu0 %v201
    %422 = vmatpush.msra.mxu0 %v200
    %423 = vmatpush.msra.mxu0 %v199
    %424 = vmatpush.msra.mxu0 %v198
    %425 = vmatpush.msra.mxu0 %v197
    %426 = vmatpush.msra.mxu0 %v196
    %427 = vmatpush.msra.mxu0 %v195
    %428 = vmatpush.msra.mxu0 %v194
    %429 = vmatmul.f32.gmra.mxu0 %v412
    %v430 = vpop.f32.mrf.mxu0
    %v431 = vadd.f32 0.0, %v430
    %432 = vdwg.mxu0
    %v433 = vadd.f32 %v190, %v431
    %v434 = vtanh.pop %v433
    %vm435 = vcmp.gt.f32.partialorder %v193, 7.0
    %v436 = vsel %vm435, 1, 0
    %437 = vset.pattern.permute.xlu0 0
    %438 = vperm.xlu0 %437, %v436
    %v439 = vpop.permute.xlu0 %438
    %vm440 = vcmp.eq.s32.totalorder %v439, 1
    %v441 = vsel %vm440, %v434, %v412
    %vm442 = vcmask 7168
    %v443 = vsel %vm442, %v193, -inf
    %v444 = vrot.slane %v443, 4
    %v445 = vmax.f32 %v443, %v444
    %v446 = vrot.slane %v445, 2
    %v447 = vmax.f32 %v445, %v446
    %v448 = vrot.slane %v447, 1
    %v449 = vmax.f32 %v447, %v448
    %vm450 = vcmp.eq.f32.partialorder %v193, %v449
    %v451 = vsel %vm450, 1, 0
    %452 = vset.pattern.permute.xlu0 0
    %453 = vperm.xlu0 %452, %v451
    %v454 = vpop.permute.xlu0 %453
    %vm455 = vcmp.eq.s32.totalorder %v454, 1
    %v456 = vsel %vm455, %v441, 0.0
    %v457 = vld [vmem:[#allocation6] sm:$0xff]
    %v458 = vld [vmem:[#allocation6 + $0x8] sm:$0xff]
    %v459 = vld [vmem:[#allocation6 + $0x10] sm:$0xff]
    %v460 = vld [vmem:[#allocation6 + $0x18] sm:$0xff]
    %v461 = vld [vmem:[#allocation6 + $0x20] sm:$0xff]
    %v462 = vld [vmem:[#allocation6 + $0x28] sm:$0xff]
    %v463 = vld [vmem:[#allocation6 + $0x30] sm:$0xff]
    %v464 = vld [vmem:[#allocation6 + $0x38] sm:$0xff]
    %v465 = vld [vmem:[#allocation6 + $0x40] sm:$0xff]
    %v466 = vld [vmem:[#allocation6 + $0x48] sm:$0xff]
    %v467 = vld [vmem:[#allocation6 + $0x50] sm:$0xff]
    %v468 = vld [vmem:[#allocation6 + $0x58] sm:$0xff]
    %v469 = vld [vmem:[#allocation6 + $0x60] sm:$0xff]
    %v470 = vld [vmem:[#allocation6 + $0x68] sm:$0xff]
    %v471 = vld [vmem:[#allocation6 + $0x70] sm:$0xff]
    %v472 = vld [vmem:[#allocation6 + $0x78] sm:$0xff]
    %v473 = vld [vmem:[%s6] sm:$0x1]
    %v475 = vperm.slane %v473, 0
    %477 = vmatpush.msra.mxu0 %v472
    %478 = vmatpush.msra.mxu0 %v471
    %479 = vmatpush.msra.mxu0 %v470
    %480 = vmatpush.msra.mxu0 %v469
    %481 = vmatpush.msra.mxu0 %v468
    %482 = vmatpush.msra.mxu0 %v467
    %483 = vmatpush.msra.mxu0 %v466
    %484 = vmatpush.msra.mxu0 %v465
    %485 = vmatpush.msra.mxu0 %v464
    %486 = vmatpush.msra.mxu0 %v463
    %487 = vmatpush.msra.mxu0 %v462
    %488 = vmatpush.msra.mxu0 %v461
    %489 = vmatpush.msra.mxu0 %v460
    %490 = vmatpush.msra.mxu0 %v459
    %491 = vmatpush.msra.mxu0 %v458
    %492 = vmatpush.msra.mxu0 %v457
    %493 = vmatmul.f32.gmra.mxu0 %v456
    %v494 = vpop.f32.mrf.mxu0
    %v495 = vadd.f32 %v475, %v494
    %496 = vdwg.mxu0
    %v497 = vxor.u32 %v495, 2147483648
    %v498 = vmul.f32 %v497, 1.442695
    %v499 = vpow.pop %v498
    %v500 = vadd.f32 %v499, 1.0
    %v501 = vrcp.pop %v500
    %v502 = vmul.f32 %v500, %v501
    %v503 = vsub.f32 1.0, %v502
    %v504 = vmul.f32 %v501, %v503
    %v505 = vadd.f32 %v501, %v504
    %vm506 = vweird.f32 %v500
    %vm507 = vweird.f32 %v501
    %vm508 = vmor %vm506, %vm507
    %v509 = vsel %vm508, %v501, %v505
    %v510 = vand.u32 2147483647, %v500
    %vm511 = vcmp.eq.f32.partialorder %v510, 8.507059e+37
    %v512 = vand.u32 %v500, 2147483648
    %v513 = vor.u32 1.1754944e-38, %v512
    %v514 = vsel %vm511, %v513, %v509
    %v515 = vmul.f32 1.0, %v514
    %516 = vst [vmem:[%s7] sm:$0xff] %v515
    // Predicated region
    $region42: #{_binary_rnn_forward.1} parent=1 // pred_check
      _
    $region43: #{_binary_rnn_forward.1} parent=1 // pred_check_branch
      %518 = sbr.rel (0) target = $region45
    $region44: #{_binary_rnn_forward.1} parent=1 // pred_region
      _
    $region45: #{_binary_rnn_forward.1} parent=1 // pred_fallthru
      _
    // Predicated region
    $region46: #{_binary_rnn_forward.1} parent=1 // pred_check
      _
    $region47: #{_binary_rnn_forward.1} parent=1 // pred_check_branch
      %520 = sbr.rel (0) target = $region49
    $region48: #{_binary_rnn_forward.1} parent=1 // pred_region
      _
    $region49: #{_binary_rnn_forward.1} parent=1 // pred_fallthru
      _
    %521 = vsyncpa [#allocation3], 1
    %522 = vsyncpa [#allocation5], 1

</llo_original>
